<compile_context>
chip_gen: v5e
topology: v5e:2x2
jax: 0.10.0
libtpu: 0.0.40
codegen_flags: <defaults>
</compile_context>

<pallas_src>
import jax
import jax.numpy as jnp
import numpy as np
from jax.experimental import pallas as pl
from jax.experimental.pallas import tpu as pltpu


# --------------------------------------------------------------------------
# Fused kernel: effective-weight combine + matmul + bias add.
# --------------------------------------------------------------------------
def _noisy_linear_kernel(x_ref, wmu_ref, wsig_ref, weps_ref,
                         bmu_ref, bsig_ref, beps_ref, o_ref):
    # x_ref:  (bm, IN)
    # w*_ref: (OUT, IN)      b*_ref: (1, OUT)      o_ref: (bm, OUT)
    w = wmu_ref[...] + wsig_ref[...] * weps_ref[...]            # (OUT, IN), VPU
    b = bmu_ref[...] + bsig_ref[...] * beps_ref[...]            # (1, OUT),  VPU
    # x @ W^T as one MXU matmul: contract the last dim of both operands, so no
    # explicit transpose of the (OUT, IN) weight is required.
    y = jax.lax.dot_general(
        x_ref[...], w,
        dimension_numbers=(((1,), (1,)), ((), ())),
        preferred_element_type=jnp.float32)                     # (bm, OUT)
    o_ref[...] = (y + b).astype(o_ref.dtype)


# --------------------------------------------------------------------------
# Wrapper (handles arbitrary leading dims like F.linear).
# --------------------------------------------------------------------------
def noisy_linear_forward(x, w_mu, w_sigma, w_eps, b_mu, b_sigma, b_eps,
                         *, block_b=None):
    lead_shape = x.shape[:-1]
    IN = x.shape[-1]
    OUT, IN2 = w_mu.shape
    assert IN == IN2, (IN, IN2)

    x2 = x.reshape(-1, IN).astype(jnp.float32)
    B = x2.shape[0]

    # One VMEM-sized batch tile; bigger tiles amortize per-step overhead.
    if block_b is None:
        block_b = B if B <= 512 else 512
    n_tiles = -(-B // block_b)
    B_pad = n_tiles * block_b
    if B_pad != B:
        x2 = jnp.pad(x2, ((0, B_pad - B), (0, 0)))

    # Parameter prep (constant per model): biases as (1, OUT) lane-dense rows.
    b_mu2 = b_mu.reshape(1, OUT).astype(jnp.float32)
    b_sig2 = b_sigma.reshape(1, OUT).astype(jnp.float32)
    b_eps2 = b_eps.reshape(1, OUT).astype(jnp.float32)

    rep = lambda i: (0, 0)  # parameters: same block for every batch tile

    out = pl.pallas_call(
        _noisy_linear_kernel,
        out_shape=jax.ShapeDtypeStruct((B_pad, OUT), jnp.float32),
        grid=(n_tiles,),
        in_specs=[
            pl.BlockSpec((block_b, IN), lambda i: (i, 0)),
            pl.BlockSpec((OUT, IN), rep),
            pl.BlockSpec((OUT, IN), rep),
            pl.BlockSpec((OUT, IN), rep),
            pl.BlockSpec((1, OUT), rep),
            pl.BlockSpec((1, OUT), rep),
            pl.BlockSpec((1, OUT), rep),
        ],
        out_specs=pl.BlockSpec((block_b, OUT), lambda i: (i, 0)),
        compiler_params=pltpu.CompilerParams(
            dimension_semantics=("parallel",)),
    )(x2,
      w_mu.astype(jnp.float32),
      w_sigma.astype(jnp.float32),
      w_eps.astype(jnp.float32),
      b_mu2, b_sig2, b_eps2)

    if B_pad != B:
        out = out[:B]
    return out.reshape(*lead_shape, OUT)


# --------------------------------------------------------------------------
# Pure-JAX reference (correctness check).
# --------------------------------------------------------------------------
def reference_forward(x, w_mu, w_sigma, w_eps, b_mu, b_sigma, b_eps):
    w = w_mu + w_sigma * w_eps
    b = b_mu + b_sigma * b_eps
    return x @ w.T + b


if __name__ == "__main__":
    # NoisyLinear(in_features=64, out_features=128, std_init=0.5), batch=16.
    B, IN, OUT = 16, 64, 128
    STD_INIT = 0.5

    key = jax.random.PRNGKey(0)
    kx, kwmu, kbmu, kein, keout = jax.random.split(key, 5)

    x = jax.random.normal(kx, (B, IN), dtype=jnp.float32)

    # reset_parameters(): mu ~ U(-1/sqrt(in), 1/sqrt(in)), sigma = const.
    mu_range = 1.0 / float(np.sqrt(IN))
    w_mu = jax.random.uniform(kwmu, (OUT, IN), jnp.float32, -mu_range, mu_range)
    w_sigma = jnp.full((OUT, IN), STD_INIT / float(np.sqrt(IN)), jnp.float32)
    b_mu = jax.random.uniform(kbmu, (OUT,), jnp.float32, -mu_range, mu_range)
    b_sigma = jnp.full((OUT,), STD_INIT / float(np.sqrt(OUT)), jnp.float32)

    # reset_noise(): factorized Gaussian noise, f(e) = sign(e)*sqrt(|e|).
    def scale_noise(k, n):
        e = jax.random.normal(k, (n,), jnp.float32)
        return jnp.sign(e) * jnp.sqrt(jnp.abs(e))

    eps_in = scale_noise(kein, IN)
    eps_out = scale_noise(keout, OUT)
    w_eps = jnp.outer(eps_out, eps_in)   # weight_epsilon = eps_out ⊗ eps_in
    b_eps = eps_out                      # bias_epsilon   = eps_out

    out = noisy_linear_forward(x, w_mu, w_sigma, w_eps, b_mu, b_sigma, b_eps)
    out = jax.block_until_ready(out)

    ref = jax.block_until_ready(
        reference_forward(x, w_mu, w_sigma, w_eps, b_mu, b_sigma, b_eps))

    assert out.shape == (B, OUT), out.shape
    np.testing.assert_allclose(np.asarray(out), np.asarray(ref),
                               rtol=1e-4, atol=1e-4)

    print("KERNEL_OK")
</pallas_src>

<mosaic_0001>
module attributes {stable_mosaic.version = 11 : i64} {
  func.func @_noisy_linear_kernel(%arg0: i32, %arg1: memref<16x64xf32, #tpu.memory_space<vmem>>, %arg2: memref<128x64xf32, #tpu.memory_space<vmem>>, %arg3: memref<128x64xf32, #tpu.memory_space<vmem>>, %arg4: memref<128x64xf32, #tpu.memory_space<vmem>>, %arg5: memref<1x128xf32, #tpu.memory_space<vmem>>, %arg6: memref<1x128xf32, #tpu.memory_space<vmem>>, %arg7: memref<1x128xf32, #tpu.memory_space<vmem>>, %arg8: memref<16x128xf32, #tpu.memory_space<vmem>>) attributes {dimension_semantics = [#tpu.dimension_semantics<parallel>], iteration_bounds = array<i64: 1>, scalar_prefetch = 0 : i64, scratch_operands = 0 : i64, tpu.core_type = #tpu.core_type<tc>, window_params = [{transform_indices = @transform_0, window_bounds = array<i64: 16, 64>}, {pipeline_mode = #tpu.pipeline_mode<synchronous>, transform_indices = @transform_1, window_bounds = array<i64: 128, 64>}, {pipeline_mode = #tpu.pipeline_mode<synchronous>, transform_indices = @transform_2, window_bounds = array<i64: 128, 64>}, {pipeline_mode = #tpu.pipeline_mode<synchronous>, transform_indices = @transform_3, window_bounds = array<i64: 128, 64>}, {pipeline_mode = #tpu.pipeline_mode<synchronous>, transform_indices = @transform_4, window_bounds = array<i64: 1, 128>}, {pipeline_mode = #tpu.pipeline_mode<synchronous>, transform_indices = @transform_5, window_bounds = array<i64: 1, 128>}, {pipeline_mode = #tpu.pipeline_mode<synchronous>, transform_indices = @transform_6, window_bounds = array<i64: 1, 128>}, {transform_indices = @transform_7, window_bounds = array<i64: 16, 128>}]} {
    %c0 = arith.constant 0 : index
    %c0_0 = arith.constant 0 : index
    %0 = vector.load %arg2[%c0, %c0_0] : memref<128x64xf32, #tpu.memory_space<vmem>>, vector<128x64xf32>
    %c0_1 = arith.constant 0 : index
    %c0_2 = arith.constant 0 : index
    %1 = vector.load %arg3[%c0_1, %c0_2] : memref<128x64xf32, #tpu.memory_space<vmem>>, vector<128x64xf32>
    %c0_3 = arith.constant 0 : index
    %c0_4 = arith.constant 0 : index
    %2 = vector.load %arg4[%c0_3, %c0_4] : memref<128x64xf32, #tpu.memory_space<vmem>>, vector<128x64xf32>
    %3 = arith.mulf %1, %2 : vector<128x64xf32>
    %4 = arith.addf %0, %3 : vector<128x64xf32>
    %c0_5 = arith.constant 0 : index
    %c0_6 = arith.constant 0 : index
    %5 = vector.load %arg5[%c0_5, %c0_6] : memref<1x128xf32, #tpu.memory_space<vmem>>, vector<1x128xf32>
    %c0_7 = arith.constant 0 : index
    %c0_8 = arith.constant 0 : index
    %6 = vector.load %arg6[%c0_7, %c0_8] : memref<1x128xf32, #tpu.memory_space<vmem>>, vector<1x128xf32>
    %c0_9 = arith.constant 0 : index
    %c0_10 = arith.constant 0 : index
    %7 = vector.load %arg7[%c0_9, %c0_10] : memref<1x128xf32, #tpu.memory_space<vmem>>, vector<1x128xf32>
    %8 = arith.mulf %6, %7 : vector<1x128xf32>
    %9 = arith.addf %5, %8 : vector<1x128xf32>
    %c0_11 = arith.constant 0 : index
    %c0_12 = arith.constant 0 : index
    %10 = vector.load %arg1[%c0_11, %c0_12] : memref<16x64xf32, #tpu.memory_space<vmem>>, vector<16x64xf32>
    %cst = arith.constant dense<0.000000e+00> : vector<16x128xf32>
    %11 = tpu.matmul %10, %4, %cst {dimension_numbers = #tpu.dot_dimension_numbers<[1], [1], [0], [0], [0, 0, 1, 0], [], []>} : vector<16x64xf32>, vector<128x64xf32>, vector<16x128xf32> -> vector<16x128xf32>
    %12 = vector.broadcast %9 : vector<1x128xf32> to vector<16x128xf32>
    %13 = arith.addf %11, %12 : vector<16x128xf32>
    %c0_13 = arith.constant 0 : index
    %c0_14 = arith.constant 0 : index
    %14 = vector.load %arg8[%c0_13, %c0_14] : memref<16x128xf32, #tpu.memory_space<vmem>>, vector<16x128xf32>
    tpu.vector_store %arg8[%c0_13, %c0_14], %13 {strides = array<i32>} : memref<16x128xf32, #tpu.memory_space<vmem>>, vector<16x128xf32>,
    return
  }
  func.func @transform_0(%arg0: i32) -> (i32, i32) {
    %c0_i32 = arith.constant 0 : i32
    %c0_i32_0 = arith.constant 0 : i32
    return %arg0, %c0_i32 : i32, i32
  }
  func.func @transform_1(%arg0: i32) -> (i32, i32) {
    %c0_i32 = arith.constant 0 : i32
    %c0_i32_0 = arith.constant 0 : i32
    %c0_i32_1 = arith.constant 0 : i32
    return %c0_i32, %c0_i32_0 : i32, i32
  }
  func.func @transform_2(%arg0: i32) -> (i32, i32) {
    %c0_i32 = arith.constant 0 : i32
    %c0_i32_0 = arith.constant 0 : i32
    %c0_i32_1 = arith.constant 0 : i32
    return %c0_i32, %c0_i32_0 : i32, i32
  }
  func.func @transform_3(%arg0: i32) -> (i32, i32) {
    %c0_i32 = arith.constant 0 : i32
    %c0_i32_0 = arith.constant 0 : i32
    %c0_i32_1 = arith.constant 0 : i32
    return %c0_i32, %c0_i32_0 : i32, i32
  }
  func.func @transform_4(%arg0: i32) -> (i32, i32) {
    %c0_i32 = arith.constant 0 : i32
    %c0_i32_0 = arith.constant 0 : i32
    %c0_i32_1 = arith.constant 0 : i32
    return %c0_i32, %c0_i32_0 : i32, i32
  }
  func.func @transform_5(%arg0: i32) -> (i32, i32) {
    %c0_i32 = arith.constant 0 : i32
    %c0_i32_0 = arith.constant 0 : i32
    %c0_i32_1 = arith.constant 0 : i32
    return %c0_i32, %c0_i32_0 : i32, i32
  }
  func.func @transform_6(%arg0: i32) -> (i32, i32) {
    %c0_i32 = arith.constant 0 : i32
    %c0_i32_0 = arith.constant 0 : i32
    %c0_i32_1 = arith.constant 0 : i32
    return %c0_i32, %c0_i32_0 : i32, i32
  }
  func.func @transform_7(%arg0: i32) -> (i32, i32) {
    %c0_i32 = arith.constant 0 : i32
    %c0_i32_0 = arith.constant 0 : i32
    return %arg0, %c0_i32 : i32, i32
  }
}

</mosaic_0001>

<llo_original>
// kernel: tpu_custom_call.1
$region0: #{tpu_custom_call.1}
  #allocation0 [shape = 'u32[]', space=smem, size = 0x4, offset = 0x4, fixed_abs, tag = 'smem constant byte address 0x4 - core index']
  #allocation1 [shape = 'u32[72,128]{1,0:T(1,128)}', space=vmem, size = 0x9000, scoped, tag = 'internal scratch']
  %s0 = inlined_call_operand.vmem [shape: f32[16,64], index: 0, kind: input, shape index: {}]
  %s1 = inlined_call_operand.vmem [shape: f32[128,64], index: 1, kind: input, shape index: {}]
  %s2 = inlined_call_operand.vmem [shape: f32[128,64], index: 2, kind: input, shape index: {}]
  %s3 = inlined_call_operand.vmem [shape: f32[128,64], index: 3, kind: input, shape index: {}]
  %s4 = inlined_call_operand.vmem [shape: f32[1,128], index: 4, kind: input, shape index: {}]
  %s5 = inlined_call_operand.vmem [shape: f32[1,128], index: 5, kind: input, shape index: {}]
  %s6 = inlined_call_operand.vmem [shape: f32[1,128], index: 6, kind: input, shape index: {}]
  %s7 = inlined_call_operand.hbm [shape: f32[16,128], index: 7, kind: output, shape index: {}]
  %s8 = sld [smem:[#allocation0]]
  $region38: #{tpu_custom_call.1} parent=0
    _
  %s10 = ssub.s32 1, %s8
  %s11 = scalar_select 0, %s10, %s8
  $region1: #{tpu_custom_call.1} parent=0
    #allocation2 [shape = 'u8[8192]{0}', space=vmem, size = 0x2000, scoped, tag = 'output window, operand 0, single buffered']
    #allocation3 [shape = 's32[1]{0}', space=sflag, size = 0x4, scoped, tag = 'scoped memory for tpu_custom_call.1']
    %12 = vsyncpa [#allocation3], 0
    // Predicated region
    $region2: #{tpu_custom_call.1} parent=1 // pred_check
      _
    $region3: #{tpu_custom_call.1} parent=1 // pred_check_branch
      %14 = sbr.rel (0) target = $region5
    $region4: #{tpu_custom_call.1} parent=1 // pred_region
      _
    $region5: #{tpu_custom_call.1} parent=1 // pred_fallthru
      _
    // Predicated region
    $region6: #{tpu_custom_call.1} parent=1 // pred_check
      _
    $region7: #{tpu_custom_call.1} parent=1 // pred_check_branch
      %16 = sbr.rel (0) target = $region9
    $region8: #{tpu_custom_call.1} parent=1 // pred_region
      _
    $region9: #{tpu_custom_call.1} parent=1 // pred_fallthru
      _
    // Predicated region
    $region10: #{tpu_custom_call.1} parent=1 // pred_check
      _
    $region11: #{tpu_custom_call.1} parent=1 // pred_check_branch
      %18 = sbr.rel (0) target = $region13
    $region12: #{tpu_custom_call.1} parent=1 // pred_region
      _
    $region13: #{tpu_custom_call.1} parent=1 // pred_fallthru
      _
    // Predicated region
    $region14: #{tpu_custom_call.1} parent=1 // pred_check
      _
    $region15: #{tpu_custom_call.1} parent=1 // pred_check_branch
      %20 = sbr.rel (0) target = $region17
    $region16: #{tpu_custom_call.1} parent=1 // pred_region
      _
    $region17: #{tpu_custom_call.1} parent=1 // pred_fallthru
      _
    // Predicated region
    $region18: #{tpu_custom_call.1} parent=1 // pred_check
      _
    $region19: #{tpu_custom_call.1} parent=1 // pred_check_branch
      %22 = sbr.rel (0) target = $region21
    $region20: #{tpu_custom_call.1} parent=1 // pred_region
      _
    $region21: #{tpu_custom_call.1} parent=1 // pred_fallthru
      _
    // Predicated region
    $region22: #{tpu_custom_call.1} parent=1 // pred_check
      _
    $region23: #{tpu_custom_call.1} parent=1 // pred_check_branch
      %24 = sbr.rel (0) target = $region25
    $region24: #{tpu_custom_call.1} parent=1 // pred_region
      _
    $region25: #{tpu_custom_call.1} parent=1 // pred_fallthru
      _
    // Predicated region
    $region26: #{tpu_custom_call.1} parent=1 // pred_check
      _
    $region27: #{tpu_custom_call.1} parent=1 // pred_check_branch
      %26 = sbr.rel (0) target = $region29
    $region28: #{tpu_custom_call.1} parent=1 // pred_region
      _
    $region29: #{tpu_custom_call.1} parent=1 // pred_fallthru
      _
    %v27 = vld [vmem:[%s1] sm:$0xff]
    %v28 = vld [vmem:[%s1 + $0x8] sm:$0xff]
    %v29 = vld [vmem:[%s1 + $0x10] sm:$0xff]
    %v30 = vld [vmem:[%s1 + $0x18] sm:$0xff]
    %v31 = vld [vmem:[%s1 + $0x20] sm:$0xff]
    %v32 = vld [vmem:[%s1 + $0x28] sm:$0xff]
    %v33 = vld [vmem:[%s1 + $0x30] sm:$0xff]
    %v34 = vld [vmem:[%s1 + $0x38] sm:$0xff]
    %v35 = vld [vmem:[%s1 + $0x40] sm:$0xff]
    %v36 = vld [vmem:[%s1 + $0x48] sm:$0xff]
    %v37 = vld [vmem:[%s1 + $0x50] sm:$0xff]
    %v38 = vld [vmem:[%s1 + $0x58] sm:$0xff]
    %v39 = vld [vmem:[%s1 + $0x60] sm:$0xff]
    %v40 = vld [vmem:[%s1 + $0x68] sm:$0xff]
    %v41 = vld [vmem:[%s1 + $0x70] sm:$0xff]
    %v42 = vld [vmem:[%s1 + $0x78] sm:$0xff]
    %v43 = vld [vmem:[%s2] sm:$0xff]
    %v44 = vld [vmem:[%s2 + $0x8] sm:$0xff]
    %v45 = vld [vmem:[%s2 + $0x10] sm:$0xff]
    %v46 = vld [vmem:[%s2 + $0x18] sm:$0xff]
    %v47 = vld [vmem:[%s2 + $0x20] sm:$0xff]
    %v48 = vld [vmem:[%s2 + $0x28] sm:$0xff]
    %v49 = vld [vmem:[%s2 + $0x30] sm:$0xff]
    %v50 = vld [vmem:[%s2 + $0x38] sm:$0xff]
    %v51 = vld [vmem:[%s2 + $0x40] sm:$0xff]
    %v52 = vld [vmem:[%s2 + $0x48] sm:$0xff]
    %v53 = vld [vmem:[%s2 + $0x50] sm:$0xff]
    %v54 = vld [vmem:[%s2 + $0x58] sm:$0xff]
    %v55 = vld [vmem:[%s2 + $0x60] sm:$0xff]
    %v56 = vld [vmem:[%s2 + $0x68] sm:$0xff]
    %v57 = vld [vmem:[%s2 + $0x70] sm:$0xff]
    %v58 = vld [vmem:[%s2 + $0x78] sm:$0xff]
    %v59 = vld [vmem:[%s3] sm:$0xff]
    %v60 = vld [vmem:[%s3 + $0x8] sm:$0xff]
    %v61 = vld [vmem:[%s3 + $0x10] sm:$0xff]
    %v62 = vld [vmem:[%s3 + $0x18] sm:$0xff]
    %v63 = vld [vmem:[%s3 + $0x20] sm:$0xff]
    %v64 = vld [vmem:[%s3 + $0x28] sm:$0xff]
    %v65 = vld [vmem:[%s3 + $0x30] sm:$0xff]
    %v66 = vld [vmem:[%s3 + $0x38] sm:$0xff]
    %v67 = vld [vmem:[%s3 + $0x40] sm:$0xff]
    %v68 = vld [vmem:[%s3 + $0x48] sm:$0xff]
    %v69 = vld [vmem:[%s3 + $0x50] sm:$0xff]
    %v70 = vld [vmem:[%s3 + $0x58] sm:$0xff]
    %v71 = vld [vmem:[%s3 + $0x60] sm:$0xff]
    %v72 = vld [vmem:[%s3 + $0x68] sm:$0xff]
    %v73 = vld [vmem:[%s3 + $0x70] sm:$0xff]
    %v74 = vld [vmem:[%s3 + $0x78] sm:$0xff]
    %v75 = vmul.f32 %v43, %v59
    %v76 = vmul.f32 %v44, %v60
    %v77 = vmul.f32 %v45, %v61
    %v78 = vmul.f32 %v46, %v62
    %v79 = vmul.f32 %v47, %v63
    %v80 = vmul.f32 %v48, %v64
    %v81 = vmul.f32 %v49, %v65
    %v82 = vmul.f32 %v50, %v66
    %v83 = vmul.f32 %v51, %v67
    %v84 = vmul.f32 %v52, %v68
    %v85 = vmul.f32 %v53, %v69
    %v86 = vmul.f32 %v54, %v70
    %v87 = vmul.f32 %v55, %v71
    %v88 = vmul.f32 %v56, %v72
    %v89 = vmul.f32 %v57, %v73
    %v90 = vmul.f32 %v58, %v74
    %v91 = vadd.f32 %v27, %v75
    %v92 = vadd.f32 %v28, %v76
    %v93 = vadd.f32 %v29, %v77
    %v94 = vadd.f32 %v30, %v78
    %v95 = vadd.f32 %v31, %v79
    %v96 = vadd.f32 %v32, %v80
    %v97 = vadd.f32 %v33, %v81
    %v98 = vadd.f32 %v34, %v82
    %v99 = vadd.f32 %v35, %v83
    %v100 = vadd.f32 %v36, %v84
    %v101 = vadd.f32 %v37, %v85
    %v102 = vadd.f32 %v38, %v86
    %v103 = vadd.f32 %v39, %v87
    %v104 = vadd.f32 %v40, %v88
    %v105 = vadd.f32 %v41, %v89
    %v106 = vadd.f32 %v42, %v90
    %v107 = vld [vmem:[%s4] sm:$0x1]
    %v108 = vld [vmem:[%s5] sm:$0x1]
    %v109 = vld [vmem:[%s6] sm:$0x1]
    %v110 = vmul.f32 %v108, %v109
    %v111 = vadd.f32 %v107, %v110
    %v112 = vld [vmem:[%s0] sm:$0xff]
    %v113 = vld [vmem:[%s0 + $0x8] sm:$0xff]
    %v115 = vperm.slane %v111, 0
    %vm117 = vcmask 523264
    %v119 = vsel %vm117, %v112, 0
    %v122 = vsel %vm117, %v113, 0
    %v125 = vsel %vm117, %v91, 0
    %v128 = vsel %vm117, %v92, 0
    %v131 = vsel %vm117, %v93, 0
    %v134 = vsel %vm117, %v94, 0
    %v137 = vsel %vm117, %v95, 0
    %v140 = vsel %vm117, %v96, 0
    %v143 = vsel %vm117, %v97, 0
    %v146 = vsel %vm117, %v98, 0
    %v149 = vsel %vm117, %v99, 0
    %v152 = vsel %vm117, %v100, 0
    %v155 = vsel %vm117, %v101, 0
    %v158 = vsel %vm117, %v102, 0
    %v161 = vsel %vm117, %v103, 0
    %v164 = vsel %vm117, %v104, 0
    %v167 = vsel %vm117, %v105, 0
    %v170 = vsel %vm117, %v106, 0
    %172 = vmatpush.xpose.msra.mxu0 %v170
    %173 = vmatpush.xpose.msra.mxu0 %v167
    %174 = vmatpush.xpose.msra.mxu0 %v164
    %175 = vmatpush.xpose.msra.mxu0 %v161
    %176 = vmatpush.xpose.msra.mxu0 %v158
    %177 = vmatpush.xpose.msra.mxu0 %v155
    %178 = vmatpush.xpose.msra.mxu0 %v152
    %179 = vmatpush.xpose.msra.mxu0 %v149
    %180 = vmatpush.xpose.msra.mxu0 %v146
    %181 = vmatpush.xpose.msra.mxu0 %v143
    %182 = vmatpush.xpose.msra.mxu0 %v140
    %183 = vmatpush.xpose.msra.mxu0 %v137
    %184 = vmatpush.xpose.msra.mxu0 %v134
    %185 = vmatpush.xpose.msra.mxu0 %v131
    %186 = vmatpush.xpose.msra.mxu0 %v128
    %187 = vmatpush.xpose.msra.mxu0 %v125
    %188 = vmatmul.f32.gmra.mxu0 %v119
    %v189 = vpop.f32.mrf.mxu0
    %v190 = vadd.f32 %v115, %v189
    %191 = vmatmul.f32.gmra.mxu0 %v122
    %v192 = vpop.f32.mrf.mxu0
    %v193 = vadd.f32 %v115, %v192
    %194 = vdwg.mxu0
    %195 = vst [vmem:[#allocation2] sm:$0xff] %v190
    %196 = vst [vmem:[#allocation2 + $0x8] sm:$0xff] %v193
    // Predicated region
    $region30: #{tpu_custom_call.1} parent=1 // pred_check
      _
    $region31: #{tpu_custom_call.1} parent=1 // pred_check_branch
      %198 = sbr.rel (0) target = $region33
    $region32: #{tpu_custom_call.1} parent=1 // pred_region
      %200 = vsyncadd [#allocation3], 0
      %s201 = sshll.u32 [#allocation2], 4
      %s202 = int_to_ptr.vmem [resolvable:$true] %s201
      %s203 = sshll.u32 %s7, 4
      %s204 = int_to_ptr.hbm [resolvable:$true] %s203
      %209 = dma.vmem_to_hbm [thread:$0]  %s202, 256, %s204, [#allocation3], 128, 128, 8
    $region33: #{tpu_custom_call.1} parent=1 // pred_fallthru
      _
    // Predicated region
    $region34: #{tpu_custom_call.1} parent=1 // pred_check
      _
    $region35: #{tpu_custom_call.1} parent=1 // pred_check_branch
      %211 = sbr.rel (0) target = $region37
    $region36: #{tpu_custom_call.1} parent=1 // pred_region
      %213 = dma.done [#allocation3], 256
    $region37: #{tpu_custom_call.1} parent=1 // pred_fallthru
      _
    %214 = vsyncpa [#allocation3], 1

</llo_original>
